<compile_context>
chip_gen: v6e
topology: v6e:2x2x1
jax: 0.10.0
libtpu: 0.0.40
codegen_flags: <defaults>
</compile_context>

<pallas_src>
import jax
import jax.numpy as jnp
from jax.experimental import pallas as pl
from jax.experimental.pallas import tpu as pltpu

GAMMA = 1.5    # module default
ALPHA = 0.25   # module default
LANES = 128
SUBLANES = 8


def _device_config():
    """(num_tensorcores, max_block_rows) chosen from the local TPU generation."""
    kind = ""
    try:
        kind = jax.devices()[0].device_kind.lower()
    except Exception:
        pass
    num_cores = 2 if "v7" in kind else 1          # 2 TCs per chip only on v7x
    if ("v6" in kind) or ("v7" in kind):
        max_block_rows = 8192                     # ~16 MiB double-buffered inputs < 32 MiB scoped
    else:
        max_block_rows = 4096                     # v5e (16 MiB scoped default) / unknown
    return num_cores, max_block_rows


def _make_kernel(rows_total, block_rows, blocks_per_shard, need_edge_mask):
    def kernel(pred_ref, true_ref, out_ref):
        s = pl.program_id(1)

        @pl.when(s == 0)
        def _init():
            out_ref[...] = jnp.zeros_like(out_ref)

        x = pred_ref[...].astype(jnp.float32)
        y = true_ref[...].astype(jnp.float32)

        # exp(-|x|) shared between the stable-BCE log term and the sigmoid.
        e = jnp.exp(-jnp.abs(x))
        t = 1.0 + e                               # shared; log(t) == log1p(e) since e in (0,1]
        bce = jnp.maximum(x, 0.0) - x * y + jnp.log(t)
        r = 1.0 / t                               # full-precision divide (tolerance-safe)
        p_prob = jnp.where(x >= 0.0, r, e * r)    # sigmoid(x)

        # y*a + (1-y)*(1-a) == (1-a) - (1-2a)*y  (= 0.75 - 0.5*y for a=0.25)
        alpha_factor = (1.0 - ALPHA) - (1.0 - 2.0 * ALPHA) * y
        d = jnp.abs(y - p_prob)
        if GAMMA == 1.5:
            modulating = d * jnp.sqrt(d)          # d ** 1.5 without pow()
        else:
            modulating = d ** GAMMA

        loss = bce * alpha_factor * modulating

        def _accumulate(vals):
            # (block_rows,128) -> (8,128): pure vreg adds into the resident output block.
            out_ref[...] += vals.reshape(block_rows // SUBLANES, SUBLANES, LANES).sum(axis=0)

        if need_edge_mask:
            # Only the trailing (partial or duplicated) block ever takes the masked path.
            blk = pl.program_id(0) * blocks_per_shard + s      # logical block id
            valid = rows_total - blk * block_rows              # rows valid in this block

            @pl.when(valid >= block_rows)
            def _full():
                _accumulate(loss)

            @pl.when(valid < block_rows)
            def _partial():
                row = jax.lax.broadcasted_iota(jnp.int32, (block_rows, LANES), 0)
                _accumulate(jnp.where(row < valid, loss, 0.0))
        else:
            _accumulate(loss)

    return kernel


@jax.jit
def qfocal_loss(pred, true):
    """QFocalLoss(BCEWithLogitsLoss(), gamma=1.5, alpha=0.25) with mean reduction."""
    assert pred.shape == true.shape
    n_elem = pred.size
    num_cores, max_block_rows = _device_config()

    flat_pred = pred.reshape(-1)
    flat_true = true.reshape(-1)

    # Pad only to (8,128) alignment (<= 1023 elements), never to block/shard multiples.
    rows = -(-n_elem // LANES)
    rows = -(-rows // SUBLANES) * SUBLANES
    assert rows < 2**31 - max_block_rows  # in-kernel row arithmetic is int32

    pad = rows * LANES - n_elem
    if pad:
        # Loss-annihilating pad: pred=0, true=1.5 => alpha_factor == 0 exactly, so the
        # padded elements contribute exactly zero without any in-kernel element mask.
        # TODO(synk): a truly copy-free ragged path would keep the flat inputs in HBM
        # (memory_space=pl.ANY) and DMA exact ranges manually.
        flat_pred = jnp.pad(flat_pred, (0, pad))
        flat_true = jnp.pad(flat_true, (0, pad), constant_values=1.5)

    pred2d = flat_pred.reshape(rows, LANES)   # native dtype (f32/bf16); upcast in-kernel
    true2d = flat_true.reshape(rows, LANES)

    block_rows = min(max_block_rows, rows)
    n_row_blocks = -(-rows // block_rows)

    # Shard the reduction across TensorCores only when the chip actually has 2 of them.
    shards = num_cores if n_row_blocks >= num_cores else 1
    blocks_per_shard = -(-n_row_blocks // shards)
    overhang = shards * blocks_per_shard - n_row_blocks          # 0 or 1
    need_edge_mask = (rows % block_rows != 0) or (overhang > 0)

    if overhang:
        # Clamp so the duplicated trailing block never indexes past the array; its
        # contribution is masked to zero inside the kernel.
        def idx_map(p, s):
            return (jnp.minimum(p * blocks_per_shard + s, n_row_blocks - 1), 0)
    else:
        def idx_map(p, s):
            return (p * blocks_per_shard + s, 0)

    in_spec = pl.BlockSpec((block_rows, LANES), idx_map)
    kernel = _make_kernel(rows, block_rows, blocks_per_shard, need_edge_mask)

    partials = pl.pallas_call(
        kernel,
        out_shape=jax.ShapeDtypeStruct((shards * SUBLANES, LANES), jnp.float32),
        grid_spec=pltpu.PrefetchScalarGridSpec(
            num_scalar_prefetch=0,
            grid=(shards, blocks_per_shard),
            in_specs=[in_spec, in_spec],
            out_specs=pl.BlockSpec((SUBLANES, LANES), lambda p, s: (p, 0)),
        ),
        compiler_params=pltpu.CompilerParams(
            dimension_semantics=("parallel", "arbitrary"),
        ),
    )(pred2d, true2d)

    return jnp.sum(partials) / jnp.float32(n_elem)


def _reference(pred, true, gamma=GAMMA, alpha=ALPHA):
    # Pure-JAX mirror of the PyTorch QFocalLoss(BCEWithLogitsLoss()) forward.
    x = pred.astype(jnp.float32)
    y = true.astype(jnp.float32)
    bce = jnp.maximum(x, 0.0) - x * y + jnp.log1p(jnp.exp(-jnp.abs(x)))
    p = jax.nn.sigmoid(x)
    alpha_factor = y * alpha + (1.0 - y) * (1.0 - alpha)
    modulating = jnp.abs(y - p) ** gamma
    return jnp.mean(bce * alpha_factor * modulating)


if __name__ == "__main__":
    key = jax.random.PRNGKey(0)

    # shape, pred dtype -> exercises: aligned single block, ragged/annihilating-pad,
    # aligned larger block, multi-block with partial edge block, and bf16 inputs.
    cases = [
        ((2, 4, 16, 16), jnp.float32),
        ((3, 5, 7, 11), jnp.float32),
        ((2, 16, 128, 128), jnp.float32),
        ((1025, 1024), jnp.float32),
        ((2, 4, 16, 16), jnp.bfloat16),
    ]

    for shape, pdtype in cases:
        key, k1, k2 = jax.random.split(key, 3)
        pred = jax.random.normal(k1, shape, dtype=jnp.float32).astype(pdtype)
        true = (jax.random.uniform(k2, shape) > 0.5).astype(jnp.float32)

        out = jax.block_until_ready(qfocal_loss(pred, true))
        ref = _reference(pred, true)
        assert jnp.allclose(out, ref, atol=1e-5, rtol=1e-5), (shape, pdtype, out, ref)

    print("KERNEL_OK")
</pallas_src>

<mosaic_0001>
module attributes {stable_mosaic.version = 11 : i64} {
  func.func @kernel(%arg0: i32, %arg1: i32, %arg2: memref<16x128xf32, #tpu.memory_space<vmem>>, %arg3: memref<16x128xf32, #tpu.memory_space<vmem>>, %arg4: memref<8x128xf32, #tpu.memory_space<vmem>>) attributes {dimension_semantics = [#tpu.dimension_semantics<parallel>, #tpu.dimension_semantics<arbitrary>], iteration_bounds = array<i64: 1, 1>, scalar_prefetch = 0 : i64, scratch_operands = 0 : i64, tpu.core_type = #tpu.core_type<tc>, window_params = [{transform_indices = @transform_0, window_bounds = array<i64: 16, 128>}, {transform_indices = @transform_1, window_bounds = array<i64: 16, 128>}, {transform_indices = @transform_2, window_bounds = array<i64: 8, 128>}]} {
    %c0_i32 = arith.constant 0 : i32
    %0 = arith.cmpi eq, %arg1, %c0_i32 : i32
    %1 = arith.extui %0 : i1 to i32
    %c0_i32_0 = arith.constant 0 : i32
    %2 = arith.cmpi ne, %1, %c0_i32_0 : i32
    scf.if %2 {
      %cst_15 = arith.constant 0.000000e+00 : f32
      %38 = vector.broadcast %cst_15 : f32 to vector<8x128xf32>
      %c0_16 = arith.constant 0 : index
      %c0_17 = arith.constant 0 : index
      %39 = vector.load %arg4[%c0_16, %c0_17] : memref<8x128xf32, #tpu.memory_space<vmem>>, vector<8x128xf32>
      tpu.vector_store %arg4[%c0_16, %c0_17], %38 {strides = array<i32>} : memref<8x128xf32, #tpu.memory_space<vmem>>, vector<8x128xf32>,
    } else {
    }
    %c0 = arith.constant 0 : index
    %c0_1 = arith.constant 0 : index
    %3 = vector.load %arg2[%c0, %c0_1] : memref<16x128xf32, #tpu.memory_space<vmem>>, vector<16x128xf32>
    %c0_2 = arith.constant 0 : index
    %c0_3 = arith.constant 0 : index
    %4 = vector.load %arg3[%c0_2, %c0_3] : memref<16x128xf32, #tpu.memory_space<vmem>>, vector<16x128xf32>
    %5 = math.absf %3 : vector<16x128xf32>
    %cst = arith.constant 0.000000e+00 : f32
    %6 = vector.broadcast %cst : f32 to vector<16x128xf32>
    %7 = arith.subf %6, %5 : vector<16x128xf32>
    %8 = math.exp %7 : vector<16x128xf32>
    %cst_4 = arith.constant 1.000000e+00 : f32
    %9 = vector.broadcast %cst_4 : f32 to vector<16x128xf32>
    %10 = arith.addf %9, %8 : vector<16x128xf32>
    %cst_5 = arith.constant 0.000000e+00 : f32
    %11 = vector.broadcast %cst_5 : f32 to vector<16x128xf32>
    %12 = arith.maximumf %3, %11 : vector<16x128xf32>
    %13 = arith.mulf %3, %4 : vector<16x128xf32>
    %14 = arith.subf %12, %13 : vector<16x128xf32>
    %15 = math.log %10 : vector<16x128xf32>
    %16 = arith.addf %14, %15 : vector<16x128xf32>
    %cst_6 = arith.constant 1.000000e+00 : f32
    %17 = vector.broadcast %cst_6 : f32 to vector<16x128xf32>
    %18 = arith.divf %17, %10 : vector<16x128xf32>
    %cst_7 = arith.constant 0.000000e+00 : f32
    %19 = vector.broadcast %cst_7 : f32 to vector<16x128xf32>
    %20 = arith.cmpf oge, %3, %19 : vector<16x128xf32>
    %21 = arith.mulf %8, %18 : vector<16x128xf32>
    %22 = arith.select %20, %18, %21 : vector<16x128xi1>, vector<16x128xf32>
    %cst_8 = arith.constant 5.000000e-01 : f32
    %23 = vector.broadcast %cst_8 : f32 to vector<16x128xf32>
    %24 = arith.mulf %23, %4 : vector<16x128xf32>
    %cst_9 = arith.constant 7.500000e-01 : f32
    %25 = vector.broadcast %cst_9 : f32 to vector<16x128xf32>
    %26 = arith.subf %25, %24 : vector<16x128xf32>
    %27 = arith.subf %4, %22 : vector<16x128xf32>
    %28 = math.absf %27 : vector<16x128xf32>
    %29 = math.sqrt %28 : vector<16x128xf32>
    %30 = arith.mulf %28, %29 : vector<16x128xf32>
    %31 = arith.mulf %16, %26 : vector<16x128xf32>
    %32 = arith.mulf %31, %30 : vector<16x128xf32>
    %c0_10 = arith.constant 0 : index
    %c0_11 = arith.constant 0 : index
    %33 = vector.load %arg4[%c0_10, %c0_11] : memref<8x128xf32, #tpu.memory_space<vmem>>, vector<8x128xf32>
    %34 = vector.shape_cast %32 : vector<16x128xf32> to vector<2x8x128xf32>
    %cst_12 = arith.constant dense<0.000000e+00> : vector<8x128xf32>
    %35 = vector.multi_reduction <add>, %34, %cst_12 [0] : vector<2x8x128xf32> to vector<8x128xf32>
    %36 = arith.addf %33, %35 : vector<8x128xf32>
    %c0_13 = arith.constant 0 : index
    %c0_14 = arith.constant 0 : index
    %37 = vector.load %arg4[%c0_13, %c0_14] : memref<8x128xf32, #tpu.memory_space<vmem>>, vector<8x128xf32>
    tpu.vector_store %arg4[%c0_13, %c0_14], %36 {strides = array<i32>} : memref<8x128xf32, #tpu.memory_space<vmem>>, vector<8x128xf32>,
    return
  }
  func.func @transform_0(%arg0: i32, %arg1: i32) -> (i32, i32) {
    %c1_i32 = arith.constant 1 : i32
    %0 = arith.muli %arg0, %c1_i32 : i32
    %1 = arith.addi %0, %arg1 : i32
    %c0_i32 = arith.constant 0 : i32
    %c0_i32_0 = arith.constant 0 : i32
    return %1, %c0_i32 : i32, i32
  }
  func.func @transform_1(%arg0: i32, %arg1: i32) -> (i32, i32) {
    %c1_i32 = arith.constant 1 : i32
    %0 = arith.muli %arg0, %c1_i32 : i32
    %1 = arith.addi %0, %arg1 : i32
    %c0_i32 = arith.constant 0 : i32
    %c0_i32_0 = arith.constant 0 : i32
    return %1, %c0_i32 : i32, i32
  }
  func.func @transform_2(%arg0: i32, %arg1: i32) -> (i32, i32) {
    %c0_i32 = arith.constant 0 : i32
    %c0_i32_0 = arith.constant 0 : i32
    return %arg0, %c0_i32 : i32, i32
  }
}

</mosaic_0001>

<llo_original>
// kernel: qfocal_loss.1
$region0: #{qfocal_loss.1}
  #allocation0 [shape = 'u32[]', space=smem, size = 0x4, offset = 0x4, fixed_abs, tag = 'smem constant byte address 0x4 - core index']
  #allocation1 [shape = 'u32[144,128]{1,0:T(1,128)}', space=vmem, size = 0x12000, scoped, tag = 'internal scratch']
  %s0 = inlined_call_operand.vmem [shape: f32[16,128], index: 0, kind: input, shape index: {}]
  %s1 = inlined_call_operand.vmem [shape: f32[16,128], index: 1, kind: input, shape index: {}]
  %s2 = inlined_call_operand.vmem [shape: f32[8,128], index: 2, kind: output, shape index: {}]
  %s3 = sld [smem:[#allocation0]]
  $region22: #{qfocal_loss.1} parent=0
    _
  %s5 = ssub.s32 1, %s3
  %s6 = scalar_select 0, %s5, %s3
  // Predicated region
  $region2: #{qfocal_loss.1} parent=0 // pred_check
    _
  $region3: #{qfocal_loss.1} parent=0 // pred_check_branch
    %8 = sbr.rel (0) target = $region5
  $region4: #{qfocal_loss.1} parent=0 // pred_region
    %s9 = sadd.s32 0, 0
    %s10 = smul.u32 2, %s9
    %p11 = scmp.lt.s32.totalorder %s10, 1
    %s12 = scalar_select %p11, %s10, 1
    %s13 = smul.addr %s12, 8
    %s14 = scalar_lea.vmem %s0, %s13
    %s15 = sadd.s32 0, 0
    %s16 = smul.u32 2, %s15
  $region5: #{qfocal_loss.1} parent=0 // pred_fallthru
    _
  // Predicated region
  $region6: #{qfocal_loss.1} parent=0 // pred_check
    _
  $region7: #{qfocal_loss.1} parent=0 // pred_check_branch
    %18 = sbr.rel (0) target = $region9
  $region8: #{qfocal_loss.1} parent=0 // pred_region
    %s19 = sadd.s32 0, 0
    %s20 = smul.u32 2, %s19
    %p21 = scmp.lt.s32.totalorder %s20, 1
    %s22 = scalar_select %p21, %s20, 1
    %s23 = smul.addr %s22, 8
    %s24 = scalar_lea.vmem %s1, %s23
    %s25 = sadd.s32 0, 0
    %s26 = smul.u32 2, %s25
  $region9: #{qfocal_loss.1} parent=0 // pred_fallthru
    _
  %s27 = sadd.s32 0, 0
  %s28 = smul.u32 2, %s27
  %p29 = scmp.lt.s32.totalorder %s28, 1
  %s30 = scalar_select %p29, %s28, 1
  %s31 = smul.addr %s30, 8
  %s32 = scalar_lea.vmem %s0, %s31
  %s33 = sadd.s32 0, 0
  %s34 = smul.u32 2, %s33
  %p35 = scmp.lt.s32.totalorder %s34, 1
  %s36 = scalar_select %p35, %s34, 1
  %s37 = smul.addr %s36, 8
  %s38 = scalar_lea.vmem %s1, %s37
  %s39 = sadd.s32 0, 0
  %s40 = smul.u32 2, %s39
  %p41 = scmp.lt.s32.totalorder %s40, 1
  %s42 = scalar_select %p41, %s40, 1
  %s43 = smul.addr %s42, 8
  %s44 = scalar_lea.vmem %s0, %s43
  %s45 = sadd.s32 0, 0
  %s46 = smul.u32 2, %s45
  %s47 = sadd.s32 0, 0
  %s48 = smul.u32 2, %s47
  %p49 = scmp.lt.s32.totalorder %s48, 1
  %s50 = scalar_select %p49, %s48, 1
  %s51 = smul.addr %s50, 8
  %s52 = scalar_lea.vmem %s1, %s51
  %s53 = sadd.s32 0, 0
  %s54 = smul.u32 2, %s53
  %p55 = scmp.eq.s32.totalorder 0, 0
  // Predicated region
  $region10: #{qfocal_loss.1} parent=0 // pred_check
    %p56 = pneg %p55
  $region11: #{qfocal_loss.1} parent=0 // pred_check_branch
    %58 = sbr.rel (%p56) target = $region13
  $region12: #{qfocal_loss.1} parent=0 // pred_region
    %59 = vst [vmem:[%s2] sm:$0xff] 0.0
  $region13: #{qfocal_loss.1} parent=0 // pred_fallthru
    _
  %v60 = vld [vmem:[%s44] sm:$0xff]
  %v61 = vld [vmem:[%s44 + $0x8] sm:$0xff]
  %v62 = vld [vmem:[%s52] sm:$0xff]
  %v63 = vld [vmem:[%s52 + $0x8] sm:$0xff]
  %v64 = vand.u32 2147483647, %v60
  %v65 = vand.u32 2147483647, %v61
  %v66 = vsub.f32 0.0, %v64
  %v67 = vsub.f32 0.0, %v65
  %v68 = vmul.f32 %v66, 1.442695
  %v69 = vpow.pop %v68
  %v70 = vmul.f32 %v67, 1.442695
  %v71 = vpow.pop %v70
  %v72 = vadd.f32 %v69, 1.0
  %v73 = vadd.f32 %v71, 1.0
  %v74 = vmax.f32 %v60, 0.0
  %v75 = vmax.f32 %v61, 0.0
  %v76 = vmul.f32 %v60, %v62
  %v77 = vmul.f32 %v61, %v63
  %v78 = vsub.f32 %v74, %v76
  %v79 = vsub.f32 %v75, %v77
  %v80 = vlog2.pop %v72
  %v81 = vmul.f32 %v80, 0.6931472
  %v82 = vlog2.pop %v73
  %v83 = vmul.f32 %v82, 0.6931472
  %v84 = vadd.f32 %v78, %v81
  %v85 = vadd.f32 %v79, %v83
  %v86 = vrcp.pop %v72
  %v87 = vmul.f32 1.0, %v86
  %v88 = vrcp.pop %v73
  %v89 = vmul.f32 1.0, %v88
  %vm90 = vcmp.ge.f32.partialorder %v60, 0.0
  %vm91 = vcmp.ge.f32.partialorder %v61, 0.0
  %v92 = vmul.f32 %v69, %v87
  %v93 = vmul.f32 %v71, %v89
  %v94 = vsel %vm90, %v87, %v92
  %v95 = vsel %vm91, %v89, %v93
  %v96 = vmul.f32 %v62, 0.5
  %v97 = vmul.f32 %v63, 0.5
  %v98 = vsub.f32 0.75, %v96
  %v99 = vsub.f32 0.75, %v97
  %v100 = vsub.f32 %v62, %v94
  %v101 = vsub.f32 %v63, %v95
  %v102 = vand.u32 2147483647, %v100
  %v103 = vand.u32 2147483647, %v101
  %v104 = vrsqrt.pop %v102
  %v105 = vmul.f32 %v102, %v104
  %vm106 = vcmp.eq.f32.partialorder %v102, inf
  %v107 = vsel %vm106, %v102, %v105
  %vm108 = vcmp.eq.f32.partialorder %v102, 0.0
  %v109 = vand.u32 %v102, 2147483648
  %v110 = vsel %vm108, %v109, %v107
  %v111 = vrsqrt.pop %v103
  %v112 = vmul.f32 %v103, %v111
  %vm113 = vcmp.eq.f32.partialorder %v103, inf
  %v114 = vsel %vm113, %v103, %v112
  %vm115 = vcmp.eq.f32.partialorder %v103, 0.0
  %v116 = vand.u32 %v103, 2147483648
  %v117 = vsel %vm115, %v116, %v114
  %v118 = vmul.f32 %v102, %v110
  %v119 = vmul.f32 %v103, %v117
  %v120 = vmul.f32 %v84, %v98
  %v121 = vmul.f32 %v85, %v99
  %v122 = vmul.f32 %v120, %v118
  %v123 = vmul.f32 %v121, %v119
  %v124 = vld [vmem:[%s2] sm:$0xff]
  %v125 = vadd.f32 %v122, %v123
  %v126 = vadd.f32 %v124, %v125
  %127 = vst [vmem:[%s2] sm:$0xff] %v126
  // Predicated region
  $region14: #{qfocal_loss.1} parent=0 // pred_check
    _
  $region15: #{qfocal_loss.1} parent=0 // pred_check_branch
    %129 = sbr.rel (0) target = $region17
  $region16: #{qfocal_loss.1} parent=0 // pred_region
    _
  $region17: #{qfocal_loss.1} parent=0 // pred_fallthru
    _
  // Predicated region
  $region18: #{qfocal_loss.1} parent=0 // pred_check
    _
  $region19: #{qfocal_loss.1} parent=0 // pred_check_branch
    %131 = sbr.rel (0) target = $region21
  $region20: #{qfocal_loss.1} parent=0 // pred_region
    _
  $region21: #{qfocal_loss.1} parent=0 // pred_fallthru
    _

</llo_original>
